<compile_context>
chip_gen: v7x
topology: tpu7x:2x2x1
jax: 0.10.0
libtpu: 0.0.40
codegen_flags: <defaults>
</compile_context>

<pallas_src>
import functools

import jax
import jax.numpy as jnp
from jax.experimental import pallas as pl
from jax.experimental.pallas import tpu as pltpu

_EPS = 1e-12  # matches ATen cosine_embedding_loss EPSILON


def _embedding_loss_kernel(x_ref, t_ref, loss_ref, centers_acc, counts_acc,
                           ids_ref, *, num_classes, hw_total, tile_hw,
                           needs_mask):
    n = pl.program_id(0)
    hw = pl.program_id(1)
    K = num_classes

    is_first = jnp.logical_and(n == 0, hw == 0)
    is_last = jnp.logical_and(n == pl.num_programs(0) - 1,
                              hw == pl.num_programs(1) - 1)

    @pl.when(is_first)
    def _init():
        centers_acc[...] = jnp.zeros_like(centers_acc)
        counts_acc[...] = jnp.zeros_like(counts_acc)
        # Hoisted class-id iota: built once, reused by every pixel tile
        # (JAX does not CSE broadcast_in_dim across grid steps).
        ids_ref[...] = jax.lax.broadcasted_iota(jnp.int32, ids_ref.shape, 0)

    x = x_ref[0]      # (C, TP) embedding tile, pixels in lanes, native dtype
    t = t_ref[0]      # (1, TP) int32 labels

    if needs_mask:
        # Last tile may run past H*W: neutralize out-of-range lanes explicitly.
        # Never rely on onehot zeros to kill OOB garbage (0 * NaN == NaN).
        pix = hw * tile_hw + jax.lax.broadcasted_iota(jnp.int32, (1, tile_hw), 1)
        valid = pix < hw_total
        t = jnp.where(valid, t, -1)
        x = jnp.where(valid, x, jnp.zeros_like(x))

    # one-hot class mask for this tile: hit[i, p] = (t[p] == i)
    hit = ids_ref[...] == t                        # (K, TP) bool
    onehot = hit.astype(x.dtype)                   # MXU ingests x's native dtype

    # masked per-channel sums on the MXU (contract the pixel/lane axis)
    centers_acc[...] += jax.lax.dot_general(
        onehot, x, (((1,), (1,)), ((), ())),
        preferred_element_type=jnp.float32)        # (K, C) f32

    # exact pixel counts: per-tile partial in f32 (tile <= 2048 is exactly
    # representable), accumulated in int32.  Lane-reduce on the XLU is tiny for
    # small K; for large K fold it into the matmul via an appended ones-row.
    counts_acc[...] += jnp.sum(hit.astype(jnp.float32), axis=1,
                               keepdims=True).astype(jnp.int32)

    @pl.when(is_last)
    def _finalize():
        counts = jnp.maximum(counts_acc[...].astype(jnp.float32), 1.0)
        centers = centers_acc[...] / counts                       # (K, C)

        # gram[j, i] = center_j . center_i
        gram = jax.lax.dot_general(
            centers, centers, (((1,), (1,)), ((), ())),
            preferred_element_type=jnp.float32)                   # (K, K)
        mag = jnp.sum(centers * centers, axis=1, keepdims=True) + _EPS  # (K, 1)
        denom = jnp.sqrt(mag * jnp.transpose(mag, (1, 0)))        # (K, K)
        cos = gram / denom

        row = jax.lax.broadcasted_iota(jnp.int32, (K, K), 0)
        col = jax.lax.broadcasted_iota(jnp.int32, (K, K), 1)
        # label == +1 on the diagonal (j == i), -1 elsewhere
        loss_mat = jnp.where(row == col, 1.0 - cos, jnp.maximum(cos, 0.0))

        # sum_i (mean_j loss_ij) / K^2  ==  sum(loss_mat) / K^3
        total = jnp.sum(jnp.sum(loss_mat, axis=1, keepdims=True),
                        axis=0, keepdims=True)                    # (1, 1)
        loss_ref[...] = total / float(K * K * K)


def _choose_tile_hw(hw, c, itemsize, max_tile=2048):
    """Largest lane-aligned pixel tile whose double-buffered x slab stays small
    (safe for v5e/v6e scoped VMEM defaults and v7x's 64 MiB VMEM)."""
    tile = max_tile
    budget = 8 * 1024 * 1024          # per-input double-buffer budget
    while tile > 128 and 2 * c * tile * itemsize > budget:
        tile //= 2
    if hw <= tile:
        return hw, False              # one full-row tile: block == full dim, always legal
    return tile, (hw % tile) != 0


def embedding_loss(inputs, targets, num_classes):
    """inputs: (N, C, H, W) float; targets: (N, H, W) int labels in [0, num_classes)."""
    N, C, H, W = inputs.shape
    HW = H * W
    itemsize = jnp.dtype(inputs.dtype).itemsize

    # Free, view-only reshapes of the native NCHW layout (no transpose, no pad).
    x = inputs.reshape(N, C, HW)
    t = targets.reshape(N, 1, HW).astype(jnp.int32)

    tile_hw, needs_mask = _choose_tile_hw(HW, C, itemsize)
    num_hw_tiles = pl.cdiv(HW, tile_hw)

    kernel = functools.partial(
        _embedding_loss_kernel,
        num_classes=num_classes, hw_total=HW, tile_hw=tile_hw,
        needs_mask=needs_mask)

    cost = pl.CostEstimate(
        flops=2 * num_classes * C * N * HW + 2 * num_classes * num_classes * C,
        transcendentals=0,
        bytes_accessed=N * C * HW * itemsize + N * HW * 4 + 4)

    # TODO(synk): on v7x, split the pixel loop across the 2 TensorCores with
    # per-core partial (K,C)/(K,1) accumulators plus a tiny combine pass; the
    # single shared accumulator below requires both grid axes to be "arbitrary".
    loss = pl.pallas_call(
        kernel,
        out_shape=jax.ShapeDtypeStruct((1, 1), jnp.float32),
        grid_spec=pltpu.PrefetchScalarGridSpec(
            num_scalar_prefetch=0,
            grid=(N, num_hw_tiles),
            in_specs=[
                pl.BlockSpec((1, C, tile_hw), lambda n, hw: (n, 0, hw)),  # x tile
                pl.BlockSpec((1, 1, tile_hw), lambda n, hw: (n, 0, hw)),  # targets tile
            ],
            out_specs=pl.BlockSpec((1, 1), lambda n, hw: (0, 0)),  # resident scalar out
            scratch_shapes=[
                pltpu.VMEM((num_classes, C), jnp.float32),        # center sums
                pltpu.VMEM((num_classes, 1), jnp.int32),          # exact pixel counts
                pltpu.VMEM((num_classes, tile_hw), jnp.int32),    # hoisted class ids
            ],
        ),
        compiler_params=pltpu.CompilerParams(
            dimension_semantics=("arbitrary", "arbitrary")),
        cost_estimate=cost,
    )(x, t)
    return loss[0, 0]


def embedding_loss_reference(inputs, targets, num_classes):
    """Pure-JAX reference mirroring the PyTorch module line by line."""
    N, C, H, W = inputs.shape
    x = jnp.transpose(inputs, (1, 0, 2, 3)).reshape(C, -1).astype(jnp.float32)  # (C, P)
    t = targets.reshape(-1)
    centers = []
    for i in range(num_classes):
        mask = (t == i).astype(jnp.float32)
        cnt = jnp.maximum(mask.sum(), 1.0)
        centers.append((x * mask[None, :]).sum(axis=1) / cnt)
    centers = jnp.stack(centers)                              # (K, C)
    total = 0.0
    for i in range(num_classes):
        x1 = centers
        x2 = jnp.broadcast_to(centers[i], centers.shape)
        prod = (x1 * x2).sum(1)
        m1 = (x1 * x1).sum(1) + _EPS
        m2 = (x2 * x2).sum(1) + _EPS
        cos = prod / jnp.sqrt(m1 * m2)
        label = jnp.where(jnp.arange(num_classes) == i, 1, -1)
        per = jnp.where(label == 1, 1.0 - cos, jnp.maximum(cos, 0.0))
        total = total + per.mean()
    return total / (num_classes * num_classes)


if __name__ == "__main__":
    key = jax.random.PRNGKey(0)
    k1, k2 = jax.random.split(key)

    N, C, H, W = 2, 4, 16, 16
    num_classes = 4

    inputs = jax.random.normal(k1, (N, C, H, W), dtype=jnp.float32)
    targets = jax.random.randint(k2, (N, H, W), 0, num_classes, dtype=jnp.int32)

    loss = embedding_loss(inputs, targets, num_classes)
    loss = jax.block_until_ready(loss)

    ref = embedding_loss_reference(inputs, targets, num_classes)
    assert jnp.allclose(loss, ref, atol=1e-5, rtol=1e-5), (loss, ref)

    print("KERNEL_OK")
</pallas_src>

<mosaic_0001>
module attributes {stable_mosaic.version = 11 : i64} {
  func.func @_embedding_loss_kernel(%arg0: i32, %arg1: i32, %arg2: memref<1x4x256xf32, #tpu.memory_space<vmem>>, %arg3: memref<1x1x256xi32, #tpu.memory_space<vmem>>, %arg4: memref<1x1xf32, #tpu.memory_space<vmem>>, %arg5: memref<4x4xf32, #tpu.memory_space<vmem>>, %arg6: memref<4x1xi32, #tpu.memory_space<vmem>>, %arg7: memref<4x256xi32, #tpu.memory_space<vmem>>) attributes {dimension_semantics = [#tpu.dimension_semantics<arbitrary>, #tpu.dimension_semantics<arbitrary>], iteration_bounds = array<i64: 2, 1>, scalar_prefetch = 0 : i64, scratch_operands = 3 : i64, tpu.core_type = #tpu.core_type<tc>, window_params = [{transform_indices = @transform_0, window_bounds = array<i64: 1, 4, 256>}, {transform_indices = @transform_1, window_bounds = array<i64: 1, 1, 256>}, {pipeline_mode = #tpu.pipeline_mode<synchronous>, transform_indices = @transform_2, window_bounds = array<i64: 1, 1>}]} {
    %c0_i32 = arith.constant 0 : i32
    %0 = arith.cmpi eq, %arg0, %c0_i32 : i32
    %c0_i32_0 = arith.constant 0 : i32
    %1 = arith.cmpi eq, %arg1, %c0_i32_0 : i32
    %2 = arith.andi %0, %1 : i1
    %c1_i32 = arith.constant 1 : i32
    %3 = arith.cmpi eq, %arg0, %c1_i32 : i32
    %c0_i32_1 = arith.constant 0 : i32
    %4 = arith.cmpi eq, %arg1, %c0_i32_1 : i32
    %5 = arith.andi %3, %4 : i1
    %6 = arith.extui %2 : i1 to i32
    %c0_i32_2 = arith.constant 0 : i32
    %7 = arith.cmpi ne, %6, %c0_i32_2 : i32
    scf.if %7 {
      %cst_20 = arith.constant 0.000000e+00 : f32
      %31 = vector.broadcast %cst_20 : f32 to vector<4x4xf32>
      %c0_21 = arith.constant 0 : index
      %c0_22 = arith.constant 0 : index
      %32 = vector.load %arg5[%c0_21, %c0_22] : memref<4x4xf32, #tpu.memory_space<vmem>>, vector<4x4xf32>
      tpu.vector_store %arg5[%c0_21, %c0_22], %31 {strides = array<i32>} : memref<4x4xf32, #tpu.memory_space<vmem>>, vector<4x4xf32>,
      %c0_i32_23 = arith.constant 0 : i32
      %33 = vector.broadcast %c0_i32_23 : i32 to vector<4x1xi32>
      %c0_24 = arith.constant 0 : index
      %c0_25 = arith.constant 0 : index
      %34 = vector.load %arg6[%c0_24, %c0_25] : memref<4x1xi32, #tpu.memory_space<vmem>>, vector<4x1xi32>
      tpu.vector_store %arg6[%c0_24, %c0_25], %33 {strides = array<i32>} : memref<4x1xi32, #tpu.memory_space<vmem>>, vector<4x1xi32>,
      %35 = tpu.iota {dimensions = array<i32: 0>} : vector<4x256xi32>
      %c0_26 = arith.constant 0 : index
      %c0_27 = arith.constant 0 : index
      %36 = vector.load %arg7[%c0_26, %c0_27] : memref<4x256xi32, #tpu.memory_space<vmem>>, vector<4x256xi32>
      tpu.vector_store %arg7[%c0_26, %c0_27], %35 {strides = array<i32>} : memref<4x256xi32, #tpu.memory_space<vmem>>, vector<4x256xi32>,
    } else {
    }
    %c0 = arith.constant 0 : index
    %c0_3 = arith.constant 0 : index
    %c0_4 = arith.constant 0 : index
    %8 = vector.load %arg2[%c0, %c0_3, %c0_4] : memref<1x4x256xf32, #tpu.memory_space<vmem>>, vector<1x4x256xf32>
    %9 = vector.shape_cast %8 : vector<1x4x256xf32> to vector<4x256xf32>
    %c0_5 = arith.constant 0 : index
    %c0_6 = arith.constant 0 : index
    %c0_7 = arith.constant 0 : index
    %10 = vector.load %arg3[%c0_5, %c0_6, %c0_7] : memref<1x1x256xi32, #tpu.memory_space<vmem>>, vector<1x1x256xi32>
    %11 = vector.shape_cast %10 : vector<1x1x256xi32> to vector<1x256xi32>
    %c0_8 = arith.constant 0 : index
    %c0_9 = arith.constant 0 : index
    %12 = vector.load %arg7[%c0_8, %c0_9] : memref<4x256xi32, #tpu.memory_space<vmem>>, vector<4x256xi32>
    %13 = vector.broadcast %11 : vector<1x256xi32> to vector<4x256xi32>
    %14 = arith.cmpi eq, %12, %13 : vector<4x256xi32>
    %15 = arith.extui %14 : vector<4x256xi1> to vector<4x256xi32>
    %16 = arith.sitofp %15 : vector<4x256xi32> to vector<4x256xf32>
    %c0_10 = arith.constant 0 : index
    %c0_11 = arith.constant 0 : index
    %17 = vector.load %arg5[%c0_10, %c0_11] : memref<4x4xf32, #tpu.memory_space<vmem>>, vector<4x4xf32>
    %cst = arith.constant dense<0.000000e+00> : vector<4x4xf32>
    %18 = tpu.matmul %16, %9, %cst {dimension_numbers = #tpu.dot_dimension_numbers<[1], [1], [0], [0], [0, 0, 1, 0], [], []>} : vector<4x256xf32>, vector<4x256xf32>, vector<4x4xf32> -> vector<4x4xf32>
    %19 = arith.addf %17, %18 : vector<4x4xf32>
    %c0_12 = arith.constant 0 : index
    %c0_13 = arith.constant 0 : index
    %20 = vector.load %arg5[%c0_12, %c0_13] : memref<4x4xf32, #tpu.memory_space<vmem>>, vector<4x4xf32>
    tpu.vector_store %arg5[%c0_12, %c0_13], %19 {strides = array<i32>} : memref<4x4xf32, #tpu.memory_space<vmem>>, vector<4x4xf32>,
    %c0_14 = arith.constant 0 : index
    %c0_15 = arith.constant 0 : index
    %21 = vector.load %arg6[%c0_14, %c0_15] : memref<4x1xi32, #tpu.memory_space<vmem>>, vector<4x1xi32>
    %22 = arith.extui %14 : vector<4x256xi1> to vector<4x256xi32>
    %23 = arith.sitofp %22 : vector<4x256xi32> to vector<4x256xf32>
    %cst_16 = arith.constant dense<0.000000e+00> : vector<4xf32>
    %24 = vector.multi_reduction <add>, %23, %cst_16 [1] : vector<4x256xf32> to vector<4xf32>
    %25 = vector.shape_cast %24 : vector<4xf32> to vector<4x1xf32>
    %26 = arith.fptosi %25 : vector<4x1xf32> to vector<4x1xi32>
    %27 = arith.addi %21, %26 : vector<4x1xi32>
    %c0_17 = arith.constant 0 : index
    %c0_18 = arith.constant 0 : index
    %28 = vector.load %arg6[%c0_17, %c0_18] : memref<4x1xi32, #tpu.memory_space<vmem>>, vector<4x1xi32>
    tpu.vector_store %arg6[%c0_17, %c0_18], %27 {strides = array<i32>} : memref<4x1xi32, #tpu.memory_space<vmem>>, vector<4x1xi32>,
    %29 = arith.extui %5 : i1 to i32
    %c0_i32_19 = arith.constant 0 : i32
    %30 = arith.cmpi ne, %29, %c0_i32_19 : i32
    scf.if %30 {
      %c0_20 = arith.constant 0 : index
      %c0_21 = arith.constant 0 : index
      %31 = vector.load %arg6[%c0_20, %c0_21] : memref<4x1xi32, #tpu.memory_space<vmem>>, vector<4x1xi32>
      %32 = arith.sitofp %31 : vector<4x1xi32> to vector<4x1xf32>
      %cst_22 = arith.constant 1.000000e+00 : f32
      %33 = vector.broadcast %cst_22 : f32 to vector<4x1xf32>
      %34 = arith.maximumf %32, %33 : vector<4x1xf32>
      %c0_23 = arith.constant 0 : index
      %c0_24 = arith.constant 0 : index
      %35 = vector.load %arg5[%c0_23, %c0_24] : memref<4x4xf32, #tpu.memory_space<vmem>>, vector<4x4xf32>
      %36 = vector.broadcast %34 : vector<4x1xf32> to vector<4x4xf32>
      %37 = arith.divf %35, %36 : vector<4x4xf32>
      %cst_25 = arith.constant dense<0.000000e+00> : vector<4x4xf32>
      %38 = tpu.matmul %37, %37, %cst_25 {dimension_numbers = #tpu.dot_dimension_numbers<[1], [1], [0], [0], [0, 0, 1, 0], [], []>} : vector<4x4xf32>, vector<4x4xf32>, vector<4x4xf32> -> vector<4x4xf32>
      %39 = arith.mulf %37, %37 : vector<4x4xf32>
      %cst_26 = arith.constant dense<0.000000e+00> : vector<4xf32>
      %40 = vector.multi_reduction <add>, %39, %cst_26 [1] : vector<4x4xf32> to vector<4xf32>
      %41 = vector.shape_cast %40 : vector<4xf32> to vector<4x1xf32>
      %cst_27 = arith.constant 9.99999996E-13 : f32
      %42 = vector.broadcast %cst_27 : f32 to vector<4x1xf32>
      %43 = arith.addf %41, %42 : vector<4x1xf32>
      %44 = tpu.transpose %43, [1, 0] : vector<4x1xf32> -> vector<1x4xf32>
      %45 = vector.broadcast %43 : vector<4x1xf32> to vector<4x4xf32>
      %46 = vector.broadcast %44 : vector<1x4xf32> to vector<4x4xf32>
      %47 = arith.mulf %45, %46 : vector<4x4xf32>
      %48 = math.sqrt %47 : vector<4x4xf32>
      %49 = arith.divf %38, %48 : vector<4x4xf32>
      %50 = tpu.iota {dimensions = array<i32: 0>} : vector<4x4xi32>
      %51 = tpu.iota {dimensions = array<i32: 1>} : vector<4x4xi32>
      %52 = arith.cmpi eq, %50, %51 : vector<4x4xi32>
      %cst_28 = arith.constant 1.000000e+00 : f32
      %53 = vector.broadcast %cst_28 : f32 to vector<4x4xf32>
      %54 = arith.subf %53, %49 : vector<4x4xf32>
      %cst_29 = arith.constant 0.000000e+00 : f32
      %55 = vector.broadcast %cst_29 : f32 to vector<4x4xf32>
      %56 = arith.maximumf %49, %55 : vector<4x4xf32>
      %57 = arith.select %52, %54, %56 : vector<4x4xi1>, vector<4x4xf32>
      %cst_30 = arith.constant dense<0.000000e+00> : vector<4xf32>
      %58 = vector.multi_reduction <add>, %57, %cst_30 [1] : vector<4x4xf32> to vector<4xf32>
      %59 = vector.shape_cast %58 : vector<4xf32> to vector<4x1xf32>
      %cst_31 = arith.constant dense<0.000000e+00> : vector<1xf32>
      %60 = vector.multi_reduction <add>, %59, %cst_31 [0] : vector<4x1xf32> to vector<1xf32>
      %61 = vector.shape_cast %60 : vector<1xf32> to vector<1x1xf32>
      %cst_32 = arith.constant 6.400000e+01 : f32
      %62 = vector.broadcast %cst_32 : f32 to vector<1x1xf32>
      %63 = arith.divf %61, %62 : vector<1x1xf32>
      %c0_33 = arith.constant 0 : index
      %c0_34 = arith.constant 0 : index
      %64 = vector.load %arg4[%c0_33, %c0_34] : memref<1x1xf32, #tpu.memory_space<vmem>>, vector<1x1xf32>
      tpu.vector_store %arg4[%c0_33, %c0_34], %63 {strides = array<i32>} : memref<1x1xf32, #tpu.memory_space<vmem>>, vector<1x1xf32>,
    } else {
    }
    return
  }
  func.func @transform_0(%arg0: i32, %arg1: i32) -> (i32, i32, i32) {
    %c0_i32 = arith.constant 0 : i32
    %c0_i32_0 = arith.constant 0 : i32
    return %arg0, %c0_i32, %arg1 : i32, i32, i32
  }
  func.func @transform_1(%arg0: i32, %arg1: i32) -> (i32, i32, i32) {
    %c0_i32 = arith.constant 0 : i32
    %c0_i32_0 = arith.constant 0 : i32
    return %arg0, %c0_i32, %arg1 : i32, i32, i32
  }
  func.func @transform_2(%arg0: i32, %arg1: i32) -> (i32, i32) {
    %c0_i32 = arith.constant 0 : i32
    %c0_i32_0 = arith.constant 0 : i32
    %c0_i32_1 = arith.constant 0 : i32
    return %c0_i32, %c0_i32_0 : i32, i32
  }
}

</mosaic_0001>

<llo_original>
// kernel: tpu_custom_call.1
$region0: #{tpu_custom_call.1}
  #allocation0 [shape = 'u32[]', space=smem, size = 0x4, offset = 0x4, fixed_abs, tag = 'smem constant byte address 0x4 - core index']
  #allocation1 [shape = 'u32[144,128]{1,0:T(1,128)}', space=vmem, size = 0x12000, scoped, tag = 'internal scratch']
  #allocation2 [shape = 'f32[4,4]{1,0:T(4,128)}', space=vmem, size = 0x800, scoped, tag = 'scratch operand']
  #allocation3 [shape = 's32[4,1]{1,0:T(4,128)}', space=vmem, size = 0x800, scoped, tag = 'scratch operand']
  #allocation4 [shape = 's32[4,256]{1,0:T(4,128)}', space=vmem, size = 0x1000, scoped, tag = 'scratch operand']
  %s0 = inlined_call_operand.hbm [shape: f32[2,4,256], index: 0, kind: input, shape index: {}]
  %s1 = inlined_call_operand.hbm [shape: s32[2,1,256], index: 1, kind: input, shape index: {}]
  %s2 = inlined_call_operand.hbm [shape: f32[1,1], index: 2, kind: output, shape index: {}]
  %s3 = sld [smem:[#allocation0]]
  $region57: #{tpu_custom_call.1} parent=0
    _
  %s5 = ssub.s32 1, %s3
  %s6 = scalar_select 0, %s5, %s3
  $region1: #{tpu_custom_call.1} parent=0
    #allocation5 [shape = 'u8[8192]{0}', space=vmem, size = 0x2000, scoped, tag = 'input window, operand 0']
    #allocation6 [shape = 's32[2]{0}', space=sflag, size = 0x8, scoped, tag = 'scoped memory for tpu_custom_call.1']
    #allocation7 [shape = 's32[2]{0}', space=sflag, size = 0x8, scoped, tag = 'scoped memory for tpu_custom_call.1']
    #allocation8 [shape = 'u8[2048]{0}', space=vmem, size = 0x800, scoped, tag = 'input window, operand 1']
    #allocation9 [shape = 's32[2]{0}', space=sflag, size = 0x8, scoped, tag = 'scoped memory for tpu_custom_call.1']
    #allocation10 [shape = 'u8[512]{0}', space=vmem, size = 0x400, scoped, tag = 'output window, operand 0, single buffered']
    %7 = vsyncpa [#allocation6], 0
    %s8 = scalar_lea.sflag [#allocation6], 1
    %9 = vsyncpa %s8, 0
    %10 = vsyncpa [#allocation9], 0
    %s11 = scalar_lea.sflag [#allocation9], 1
    %12 = vsyncpa %s11, 0
    %13 = vsyncpa [#allocation7], 0
    loop: start=0, step=1, limit=4
    $region2: #{tpu_custom_call.1} parent=1 // loop_pre_header
      _
    $region3: #{tpu_custom_call.1} parent=1 // loop_header
      %s15 = sphi 0, %s19
      %p16 = scmp.ge.s32.totalorder %s15, 4
      %s22 = sphi 0, %s34
      %s23 = sphi 0, %s30
      %s24 = sphi 0, %s22
      %s25 = sphi 0, %s23
      %s26 = sphi 0, %s24
      %s27 = sphi 0, %s25
      %s39 = sphi 0, %s41
      %s42 = sphi 0, %s39
      %s43 = sphi 0, %s42
      %s59 = sphi 0, %s43
      %s67 = sphi 0, %s69
      %s70 = sphi 0, %s67
      %s71 = sphi 0, %s70
      %s87 = sphi 0, %s71
      %s91 = sphi 0, %s91
      %s93 = sphi 0, %s91
      %s94 = sphi 0, %s93
      %s108 = sphi 0, %s94
    $region4: #{tpu_custom_call.1} parent=1 // loop_header_branch
      %18 = sbr.rel (%p16) target = $region8
    $region5: #{tpu_custom_call.1} parent=1 // loop_body
      %s20 = ssub.s32 %s15, 1
      %s21 = ssub.s32 %s15, 2
      %s28 = sadd.s32 1, %s23
      %p29 = scmp.ge.s32.totalorder %s28, 1
      %s30 = scalar_select %p29, 0, %s28
      %s31 = sadd.s32 1, %s22
      %s32 = scalar_select %p29, %s31, %s22
      %p33 = scmp.ge.s32.totalorder %s32, 2
      %s34 = scalar_select %p33, 0, %s32
      %s35 = ssub.s32 %s22, %s34
      %s36 = ssub.s32 %s23, %s30
      %s37 = sor.u32 %s35, %s36
      %p38 = scmp.eq.s32.totalorder %s37, 0
      %s40 = sadd.s32 %s39, 1
      %s41 = scalar_select %p38, %s39, %s40
      %p44 = pneg %p38
      %p45 = scmp.eq.s32.totalorder %s15, 1
      %p46 = por %p44, %p45
      %p47 = scmp.ne.s32.totalorder %s39, %s42
      %p48 = scmp.eq.s32.totalorder %s15, 0
      %p49 = por %p47, %p48
      %p50 = scmp.ne.s32.totalorder %s39, %s42
      %p51 = scmp.eq.s32.totalorder %s20, 1
      %p52 = por %p50, %p51
      %p53 = scmp.ne.s32.totalorder %s42, %s43
      %p54 = scmp.eq.s32.totalorder %s20, 0
      %p55 = por %p53, %p54
      %p56 = scmp.ne.s32.totalorder %s42, %s43
      %p57 = scmp.eq.s32.totalorder %s21, 1
      %p58 = por %p56, %p57
      %p60 = scmp.ne.s32.totalorder %s43, %s59
      %p61 = scmp.eq.s32.totalorder %s21, 0
      %p62 = por %p60, %p61
      %s63 = ssub.s32 %s22, %s34
      %s64 = ssub.s32 %s23, %s30
      %s65 = sor.u32 %s63, %s64
      %p66 = scmp.eq.s32.totalorder %s65, 0
      %s68 = sadd.s32 %s67, 1
      %s69 = scalar_select %p66, %s67, %s68
      %p72 = pneg %p66
      %p73 = scmp.eq.s32.totalorder %s15, 1
      %p74 = por %p72, %p73
      %p75 = scmp.ne.s32.totalorder %s67, %s70
      %p76 = scmp.eq.s32.totalorder %s15, 0
      %p77 = por %p75, %p76
      %p78 = scmp.ne.s32.totalorder %s67, %s70
      %p79 = scmp.eq.s32.totalorder %s20, 1
      %p80 = por %p78, %p79
      %p81 = scmp.ne.s32.totalorder %s70, %s71
      %p82 = scmp.eq.s32.totalorder %s20, 0
      %p83 = por %p81, %p82
      %p84 = scmp.ne.s32.totalorder %s70, %s71
      %p85 = scmp.eq.s32.totalorder %s21, 1
      %p86 = por %p84, %p85
      %p88 = scmp.ne.s32.totalorder %s71, %s87
      %p89 = scmp.eq.s32.totalorder %s21, 0
      %p90 = por %p88, %p89
      %s92 = sadd.s32 %s91, 1
      %p95 = scmp.eq.s32.totalorder %s15, 1
      %p96 = scmp.ne.s32.totalorder %s91, %s93
      %p97 = scmp.eq.s32.totalorder %s15, 0
      %p98 = por %p96, %p97
      %p99 = scmp.ne.s32.totalorder %s91, %s93
      %p100 = scmp.eq.s32.totalorder %s20, 1
      %p101 = por %p99, %p100
      %p102 = scmp.ne.s32.totalorder %s93, %s94
      %p103 = scmp.eq.s32.totalorder %s20, 0
      %p104 = por %p102, %p103
      %p105 = scmp.ne.s32.totalorder %s93, %s94
      %p106 = scmp.eq.s32.totalorder %s21, 1
      %p107 = por %p105, %p106
      %p109 = scmp.ne.s32.totalorder %s94, %s108
      %p110 = scmp.eq.s32.totalorder %s21, 0
      %p111 = por %p109, %p110
      %p112 = scmp.le.s32.totalorder 1, %s15
      %p113 = scmp.lt.s32.totalorder %s15, 3
      %p114 = pnand %p112, %p113
      %p115 = pneg %p114
      // Predicated region
      $region9: #{tpu_custom_call.1} parent=5 // pred_check
        _
      $region10: #{tpu_custom_call.1} parent=5 // pred_check_branch
        %117 = sbr.rel (%p114) target = $region12
      $region11: #{tpu_custom_call.1} parent=5 // pred_region
        %s118 = ssub.s32 %s15, 1
      $region12: #{tpu_custom_call.1} parent=5 // pred_fallthru
        _
      %p119 = scmp.lt.s32.totalorder %s15, 2
      // Predicated region
      $region13: #{tpu_custom_call.1} parent=5 // pred_check
        %p120 = pneg %p119
      $region14: #{tpu_custom_call.1} parent=5 // pred_check_branch
        %122 = sbr.rel (%p120) target = $region16
      $region15: #{tpu_custom_call.1} parent=5 // pred_region
        // Predicated region
        $region17: #{tpu_custom_call.1} parent=15 // pred_check
          %p123 = pneg %p49
        $region18: #{tpu_custom_call.1} parent=15 // pred_check_branch
          %125 = sbr.rel (%p123) target = $region20
        $region19: #{tpu_custom_call.1} parent=15 // pred_region
          %s126 = sand.u32 %s39, 1
          %s127 = scalar_lea.sflag [#allocation6], %s126
          %s128 = sand.u32 %s39, 1
          %s129 = smul.addr %s128, 8
          %s130 = scalar_lea.vmem [#allocation5], %s129
          %s131 = smul.u32 2, %s23
          %s133 = ssub.s32 128, 128
          %134 = vsyncadd %s127, %s133
          %s135 = smul.addr %s22, 2
          %s136 = sadd.s32 %s131, %s135
          %s137 = smul.addr %s136, 64
          %s138 = scalar_lea.hbm %s0, %s137
          %s140 = sshll.u32 %s130, 4
          %s141 = int_to_ptr.vmem [resolvable:$true] %s140
          %143 = dma.hbm_to_vmem [thread:$0]  %s138, 128, %s141, %s127
        $region20: #{tpu_custom_call.1} parent=15 // pred_fallthru
          _
        // Predicated region
        $region21: #{tpu_custom_call.1} parent=15 // pred_check
          %p144 = pneg %p77
        $region22: #{tpu_custom_call.1} parent=15 // pred_check_branch
          %146 = sbr.rel (%p144) target = $region24
        $region23: #{tpu_custom_call.1} parent=15 // pred_region
          %s147 = sand.u32 %s67, 1
          %s148 = scalar_lea.sflag [#allocation9], %s147
          %s149 = sand.u32 %s67, 1
          %s150 = smul.addr %s149, 2
          %s151 = scalar_lea.vmem [#allocation8], %s150
          %s152 = smul.u32 2, %s23
          %s154 = ssub.s32 32, 32
          %155 = vsyncadd %s148, %s154
          %s156 = smul.addr %s22, 2
          %s157 = sadd.s32 %s152, %s156
          %s158 = smul.addr %s157, 16
          %s159 = scalar_lea.hbm %s1, %s158
          %s161 = sshll.u32 %s151, 4
          %s162 = int_to_ptr.vmem [resolvable:$true] %s161
          %164 = dma.hbm_to_vmem [thread:$0]  %s159, 32, %s162, %s148
        $region24: #{tpu_custom_call.1} parent=15 // pred_fallthru
          _
      $region16: #{tpu_custom_call.1} parent=5 // pred_fallthru
        _
      %p165 = scmp.le.s32.totalorder 1, %s15
      %p166 = scmp.lt.s32.totalorder %s15, 3
      %p167 = pnand %p165, %p166
      %p168 = pneg %p167
      // Predicated region
      $region25: #{tpu_custom_call.1} parent=5 // pred_check
        _
      $region26: #{tpu_custom_call.1} parent=5 // pred_check_branch
        %170 = sbr.rel (%p167) target = $region28
      $region27: #{tpu_custom_call.1} parent=5 // pred_region
        %s171 = ssub.s32 %s15, 1
        %s172 = sand.u32 %s42, 1
        %s173 = scalar_lea.sflag [#allocation6], %s172
        %s174 = sand.u32 %s42, 1
        %s175 = smul.addr %s174, 8
        %s176 = scalar_lea.vmem [#allocation5], %s175
        // Predicated region
        $region29: #{tpu_custom_call.1} parent=27 // pred_check
          %p177 = pneg %p55
        $region30: #{tpu_custom_call.1} parent=27 // pred_check_branch
          %179 = sbr.rel (%p177) target = $region32
        $region31: #{tpu_custom_call.1} parent=27 // pred_region
          %180 = dma.done %s173, 128
        $region32: #{tpu_custom_call.1} parent=27 // pred_fallthru
          _
        %s181 = sand.u32 %s70, 1
        %s182 = scalar_lea.sflag [#allocation9], %s181
        %s183 = sand.u32 %s70, 1
        %s184 = smul.addr %s183, 2
        %s185 = scalar_lea.vmem [#allocation8], %s184
        // Predicated region
        $region33: #{tpu_custom_call.1} parent=27 // pred_check
          %p186 = pneg %p83
        $region34: #{tpu_custom_call.1} parent=27 // pred_check_branch
          %188 = sbr.rel (%p186) target = $region36
        $region35: #{tpu_custom_call.1} parent=27 // pred_region
          %189 = dma.done %s182, 32
        $region36: #{tpu_custom_call.1} parent=27 // pred_fallthru
          _
        %s190 = sand.u32 %s42, 1
        %s191 = scalar_lea.sflag [#allocation6], %s190
        %s192 = sand.u32 %s42, 1
        %s193 = smul.addr %s192, 8
        %s194 = scalar_lea.vmem [#allocation5], %s193
        %p195 = pneg %p55
        %p196 = pneg %p52
        %s197 = sand.u32 %s70, 1
        %s198 = scalar_lea.sflag [#allocation9], %s197
        %s199 = sand.u32 %s70, 1
        %s200 = smul.addr %s199, 2
        %s201 = scalar_lea.vmem [#allocation8], %s200
        %p202 = pneg %p83
        %p203 = pneg %p80
        %p204 = pneg %p104
        %p205 = pneg %p101
        %s206 = smul.u32 2, %s25
        %s207 = smul.u32 2, %s25
        %p208 = scmp.eq.s32.totalorder %s24, 0
        %p209 = scmp.eq.s32.totalorder %s25, 0
        %p210 = pnand %p208, %p209
        %p211 = pneg %p210
        %p212 = scmp.eq.s32.totalorder %s24, 1
        %p213 = pnand %p212, %p209
        %p214 = pneg %p213
        // Predicated region
        $region37: #{tpu_custom_call.1} parent=27 // pred_check
          _
        $region38: #{tpu_custom_call.1} parent=27 // pred_check_branch
          %216 = sbr.rel (%p210) target = $region40
        $region39: #{tpu_custom_call.1} parent=27 // pred_region
          %vm217 = vcmask 27648
          %218 = vst.msk [vmem:[#allocation2] sm:$0xf] %vm217, 0.0
          %vm219 = vcmask 3072
          %220 = vst.msk [vmem:[#allocation3] sm:$0xf] %vm219, 0
          %v221 = vlaneseq
          %v222 = vshrl.u32 %v221, 7
          %v224 = vunpack.c.l.s4 839922192
          %v225 = vunpack.c.0.s8 %v224
          %v226 = vlaneseq
          %v227 = vshrl.u32 %v226, 7
          %v228 = vsub.s32 %v225, %v227
          %v229 = vrot.slane %v222, %v228
          %230 = vst [vmem:[#allocation4] sm:$0xff] %v229
        $region40: #{tpu_custom_call.1} parent=27 // pred_fallthru
          _
        %v231 = vld [vmem:[%s176] sm:$0xff]
        %v232 = vld [vmem:[%s185] sm:$0x3]
        %v233 = vld [vmem:[#allocation4] sm:$0xff]
        %v234 = vlaneseq
        %v235 = vshrl.u32 %v234, 7
        %v236 = vsub.s32 0, %v235
        %v237 = vrot.slane %v232, %v236
        %v238 = vlaneseq
        %v239 = vshrl.u32 %v238, 7
        %v240 = vsub.s32 1, %v239
        %v241 = vrot.slane %v232, %v240
        %v242 = vcombine.low %v237, %v241
        %vm243 = vcmp.eq.s32.totalorder %v233, %v242
        %v244 = vsel %vm243, 1, 0
        %v245 = vcvt.s32.f32 %v244
        %v246 = vld [vmem:[#allocation2] sm:$0xf]
        %v248 = vcombine.high %v245, %v245
        %v251 = vcombine.high %v231, %v231
        %253 = vmatprep.subr.mxu0 %v251
        %254 = vmatpush1.xpose.msra.mxu0 %v231
        %255 = vmatprep.subr.mxu0 0.0
        %256 = vmatpush1.xpose.msra.mxu0 0.0
        %257 = vmatprep.subr.mxu0 0.0
        %258 = vmatpush1.xpose.msra.mxu0 0.0
        %259 = vmatprep.subr.mxu0 0.0
        %260 = vmatpush1.xpose.msra.mxu0 0.0
        %261 = vmatprep.subr.mxu0 0.0
        %262 = vmatpush1.xpose.msra.mxu0 0.0
        %263 = vmatprep.subr.mxu0 0.0
        %264 = vmatpush1.xpose.msra.mxu0 0.0
        %265 = vmatprep.subr.mxu0 0.0
        %266 = vmatpush1.xpose.msra.mxu0 0.0
        %267 = vmatprep.subr.mxu0 0.0
        %268 = vmatpush1.xpose.msra.mxu0 0.0
        %269 = vmatprep.subr.mxu0 0.0
        %270 = vmatpush1.xpose.msra.mxu0 0.0
        %271 = vmatprep.subr.mxu0 0.0
        %272 = vmatpush1.xpose.msra.mxu0 0.0
        %273 = vmatprep.subr.mxu0 0.0
        %274 = vmatpush1.xpose.msra.mxu0 0.0
        %275 = vmatprep.subr.mxu0 0.0
        %276 = vmatpush1.xpose.msra.mxu0 0.0
        %277 = vmatprep.subr.mxu0 0.0
        %278 = vmatpush1.xpose.msra.mxu0 0.0
        %279 = vmatprep.subr.mxu0 0.0
        %280 = vmatpush1.xpose.msra.mxu0 0.0
        %281 = vmatprep.subr.mxu0 0.0
        %282 = vmatpush1.xpose.msra.mxu0 0.0
        %283 = vmatprep.subr.mxu0 0.0
        %284 = vmatpush1.xpose.msra.mxu0 0.0
        %285 = vmatprep.subr.mxu0 0.0
        %286 = vmatpush1.xpose.msra.mxu0 0.0
        %287 = vmatprep.subr.mxu0 0.0
        %288 = vmatpush1.xpose.msra.mxu0 0.0
        %289 = vmatprep.subr.mxu0 0.0
        %290 = vmatpush1.xpose.msra.mxu0 0.0
        %291 = vmatprep.subr.mxu0 0.0
        %292 = vmatpush1.xpose.msra.mxu0 0.0
        %293 = vmatprep.subr.mxu0 0.0
        %294 = vmatpush1.xpose.msra.mxu0 0.0
        %295 = vmatprep.subr.mxu0 0.0
        %296 = vmatpush1.xpose.msra.mxu0 0.0
        %297 = vmatprep.subr.mxu0 0.0
        %298 = vmatpush1.xpose.msra.mxu0 0.0
        %299 = vmatprep.subr.mxu0 0.0
        %300 = vmatpush1.xpose.msra.mxu0 0.0
        %301 = vmatprep.subr.mxu0 0.0
        %302 = vmatpush1.xpose.msra.mxu0 0.0
        %303 = vmatprep.subr.mxu0 0.0
        %304 = vmatpush1.xpose.msra.mxu0 0.0
        %305 = vmatprep.subr.mxu0 0.0
        %306 = vmatpush1.xpose.msra.mxu0 0.0
        %307 = vmatprep.subr.mxu0 0.0
        %308 = vmatpush1.xpose.msra.mxu0 0.0
        %309 = vmatprep.subr.mxu0 0.0
        %310 = vmatpush1.xpose.msra.mxu0 0.0
        %311 = vmatprep.subr.mxu0 0.0
        %312 = vmatpush1.xpose.msra.mxu0 0.0
        %313 = vmatprep.subr.mxu0 0.0
        %314 = vmatpush1.xpose.msra.mxu0 0.0
        %315 = vmatprep.subr.mxu0 0.0
        %316 = vmatpush1.xpose.msra.mxu0 0.0
        %317 = vmatprep.mubr.f32.mxu0 %v248
        %318 = vmatmul.mubr.f32.gmra.mrb[0].mxu0 %v245
        %v319 = vpop.f32.mrb[0].mxu0
        %v320 = vadd.f32 0.0, %v319
        %v321 = vpop.f32.mrb[0].mxu0
        %322 = vdwg.mxu0
        %v323 = vadd.f32 %v246, %v320
        %vm324 = vcmask 27648
        %325 = vst.msk [vmem:[#allocation2] sm:$0xf] %vm324, %v323
        %v326 = vld [vmem:[#allocation3] sm:$0xf]
        %vm327 = vcmask 1043456
        %v328 = vsel %vm327, %v245, 0.0
        %v329 = vsel %vm327, %v248, 0.0
        %v330 = vadd.f32 %v328, %v329
        %331 = vadd.xlane.f32.xlu0 %v330
        %v332 = vpop.xlane.xlu0 %331
        %v333 = vcvt.f32.s32.to.zero.pseudo %v332
        %v334 = vadd.s32 %v326, %v333
        %vm335 = vcmask 3072
        %336 = vst.msk [vmem:[#allocation3] sm:$0xf] %vm335, %v334
        // Predicated region
        $region41: #{tpu_custom_call.1} parent=27 // pred_check
          _
        $region42: #{tpu_custom_call.1} parent=27 // pred_check_branch
          %338 = sbr.rel (%p213) target = $region44
        $region43: #{tpu_custom_call.1} parent=27 // pred_region
          %v339 = vld [vmem:[#allocation3] sm:$0xf]
          %v340 = vcvt.s32.f32 %v339
          %v341 = vmax.f32 %v340, 1.0
          %v342 = vld [vmem:[#allocation2] sm:$0xf]
          %344 = vset.pattern.permute.xlu0 0
          %345 = vperm.xlu0 %344, %v341
          %v346 = vpop.permute.xlu0 %345
          %v348 = vrcp.pop %v346
          %v349 = vmul.f32 %v342, %v348
          %vm350 = vcmask 31744
          %v352 = vsel %vm350, %v349, 0
          %354 = vmatprep.subr.mxu0 0.0
          %355 = vmatpush1.xpose.msra.mxu0 %v352
          %356 = vmatprep.subr.mxu0 0.0
          %357 = vmatpush1.xpose.msra.mxu0 0.0
          %358 = vmatprep.subr.mxu0 0.0
          %359 = vmatpush1.xpose.msra.mxu0 0.0
          %360 = vmatprep.subr.mxu0 0.0
          %361 = vmatpush1.xpose.msra.mxu0 0.0
          %362 = vmatprep.subr.mxu0 0.0
          %363 = vmatpush1.xpose.msra.mxu0 0.0
          %364 = vmatprep.subr.mxu0 0.0
          %365 = vmatpush1.xpose.msra.mxu0 0.0
          %366 = vmatprep.subr.mxu0 0.0
          %367 = vmatpush1.xpose.msra.mxu0 0.0
          %368 = vmatprep.subr.mxu0 0.0
          %369 = vmatpush1.xpose.msra.mxu0 0.0
          %370 = vmatprep.subr.mxu0 0.0
          %371 = vmatpush1.xpose.msra.mxu0 0.0
          %372 = vmatprep.subr.mxu0 0.0
          %373 = vmatpush1.xpose.msra.mxu0 0.0
          %374 = vmatprep.subr.mxu0 0.0
          %375 = vmatpush1.xpose.msra.mxu0 0.0
          %376 = vmatprep.subr.mxu0 0.0
          %377 = vmatpush1.xpose.msra.mxu0 0.0
          %378 = vmatprep.subr.mxu0 0.0
          %379 = vmatpush1.xpose.msra.mxu0 0.0
          %380 = vmatprep.subr.mxu0 0.0
          %381 = vmatpush1.xpose.msra.mxu0 0.0
          %382 = vmatprep.subr.mxu0 0.0
          %383 = vmatpush1.xpose.msra.mxu0 0.0
          %384 = vmatprep.subr.mxu0 0.0
          %385 = vmatpush1.xpose.msra.mxu0 0.0
          %386 = vmatprep.subr.mxu0 0.0
          %387 = vmatpush1.xpose.msra.mxu0 0.0
          %388 = vmatprep.subr.mxu0 0.0
          %389 = vmatpush1.xpose.msra.mxu0 0.0
          %390 = vmatprep.subr.mxu0 0.0
          %391 = vmatpush1.xpose.msra.mxu0 0.0
          %392 = vmatprep.subr.mxu0 0.0
          %393 = vmatpush1.xpose.msra.mxu0 0.0
          %394 = vmatprep.subr.mxu0 0.0
          %395 = vmatpush1.xpose.msra.mxu0 0.0
          %396 = vmatprep.subr.mxu0 0.0
          %397 = vmatpush1.xpose.msra.mxu0 0.0
          %398 = vmatprep.subr.mxu0 0.0
          %399 = vmatpush1.xpose.msra.mxu0 0.0
          %400 = vmatprep.subr.mxu0 0.0
          %401 = vmatpush1.xpose.msra.mxu0 0.0
          %402 = vmatprep.subr.mxu0 0.0
          %403 = vmatpush1.xpose.msra.mxu0 0.0
          %404 = vmatprep.subr.mxu0 0.0
          %405 = vmatpush1.xpose.msra.mxu0 0.0
          %406 = vmatprep.subr.mxu0 0.0
          %407 = vmatpush1.xpose.msra.mxu0 0.0
          %408 = vmatprep.subr.mxu0 0.0
          %409 = vmatpush1.xpose.msra.mxu0 0.0
          %410 = vmatprep.subr.mxu0 0.0
          %411 = vmatpush1.xpose.msra.mxu0 0.0
          %412 = vmatprep.subr.mxu0 0.0
          %413 = vmatpush1.xpose.msra.mxu0 0.0
          %414 = vmatprep.subr.mxu0 0.0
          %415 = vmatpush1.xpose.msra.mxu0 0.0
          %416 = vmatprep.subr.mxu0 0.0
          %417 = vmatpush1.xpose.msra.mxu0 0.0
          %418 = vmatprep.mubr.f32.mxu0 0.0
          %419 = vmatmul.mubr.f32.gmra.mrb[0].mxu0 %v352
          %v420 = vpop.f32.mrb[0].mxu0
          %v421 = vadd.f32 0.0, %v420
          %v422 = vpop.f32.mrb[0].mxu0
          %423 = vdwg.mxu0
          %v424 = vmul.f32 %v349, %v349
          %v425 = vsel %vm324, %v424, 0.0
          %426 = vadd.xlane.f32.xlu0 %v425
          %v427 = vpop.xlane.xlu0 %426
          %v428 = vadd.f32 %v427, 1e-12
          %429 = vxpose.xlu0.b32.start [1/16] %v428, 128
          %430 = vxpose.xlu0.b32.cont [2/16] 0.0, 128
          %431 = vxpose.xlu0.b32.cont [3/16] 0.0, 128
          %432 = vxpose.xlu0.b32.cont [4/16] 0.0, 128
          %433 = vxpose.xlu0.b32.cont [5/16] 0.0, 128
          %434 = vxpose.xlu0.b32.cont [6/16] 0.0, 128
          %435 = vxpose.xlu0.b32.cont [7/16] 0.0, 128
          %436 = vxpose.xlu0.b32.cont [8/16] 0.0, 128
          %437 = vxpose.xlu0.b32.cont [9/16] 0.0, 128
          %438 = vxpose.xlu0.b32.cont [10/16] 0.0, 128
          %439 = vxpose.xlu0.b32.cont [11/16] 0.0, 128
          %440 = vxpose.xlu0.b32.cont [12/16] 0.0, 128
          %441 = vxpose.xlu0.b32.cont [13/16] 0.0, 128
          %442 = vxpose.xlu0.b32.cont [14/16] 0.0, 128
          %443 = vxpose.xlu0.b32.cont [15/16] 0.0, 128
          %444 = vxpose.xlu0.b32.end [16/16] 0.0, 128
          %v445 = vpop.trf.xlu0
          %v446 = vpop.trf.xlu0
          %v447 = vpop.trf.xlu0
          %v448 = vpop.trf.xlu0
          %v449 = vpop.trf.xlu0
          %v450 = vpop.trf.xlu0
          %v451 = vpop.trf.xlu0
          %v452 = vpop.trf.xlu0
          %v453 = vpop.trf.xlu0
          %v454 = vpop.trf.xlu0
          %v455 = vpop.trf.xlu0
          %v456 = vpop.trf.xlu0
          %v457 = vpop.trf.xlu0
          %v458 = vpop.trf.xlu0
          %v459 = vpop.trf.xlu0
          %v460 = vpop.trf.xlu0
          %v461 = vlaneseq
          %v462 = vshrl.u32 %v461, 7
          %v463 = vsub.s32 0, %v462
          %v464 = vrot.slane %v445, %v463
          %v465 = vmul.f32 %v428, %v464
          %v466 = vrsqrt.pop %v465
          %v467 = vmul.f32 %v465, %v466
          %vm468 = vcmp.eq.f32.partialorder %v465, inf
          %v469 = vsel %vm468, %v465, %v467
          %vm470 = vcmp.eq.f32.partialorder %v465, 0.0
          %v471 = vand.u32 %v465, 2147483648
          %v472 = vsel %vm470, %v471, %v469
          %v473 = vrcp.pop %v472
          %v474 = vmul.f32 %v421, %v473
          %v475 = vlaneseq
          %v476 = vshrl.u32 %v475, 7
          %v477 = vlaneseq
          %v478 = vand.u32 %v477, 127
          %vm479 = vcmp.eq.s32.totalorder %v476, %v478
          %v480 = vsub.f32 1.0, %v474
          %v481 = vmax.f32 %v474, 0.0
          %v482 = vsel %vm479, %v480, %v481
          %v483 = vsel %vm324, %v482, 0.0
          %484 = vadd.xlane.f32.xlu0 %v483
          %v485 = vpop.xlane.xlu0 %484
          %v486 = vsel %vm327, %v485, 0.0
          %v487 = vrot.slane %v486, 4
          %v488 = vadd.f32 %v486, %v487
          %v489 = vrot.slane %v488, 2
          %v490 = vadd.f32 %v488, %v489
          %v491 = vrot.slane %v490, 1
          %v492 = vadd.f32 %v490, %v491
          %v493 = vrcp.pop 64.0
          %v494 = vmul.f32 %v492, %v493
          %vm495 = vcmask 0
          %496 = vst.msk [vmem:[#allocation10] sm:$0x1] %vm495, %v494
        $region44: #{tpu_custom_call.1} parent=27 // pred_fallthru
          _
        // Predicated region
        $region45: #{tpu_custom_call.1} parent=27 // pred_check
          %p497 = pneg %p101
        $region46: #{tpu_custom_call.1} parent=27 // pred_check_branch
          %499 = sbr.rel (%p497) target = $region48
        $region47: #{tpu_custom_call.1} parent=27 // pred_region
          %s501 = ssub.s32 16, 16
          %502 = vsyncadd [#allocation7], %s501
          %s504 = sshll.u32 [#allocation10], 4
          %s505 = int_to_ptr.vmem [resolvable:$true] %s504
          %507 = dma.vmem_to_hbm [thread:$0]  %s505, 16, %s2, [#allocation7]
        $region48: #{tpu_custom_call.1} parent=27 // pred_fallthru
          _
        // Predicated region
        $region49: #{tpu_custom_call.1} parent=27 // pred_check
          %p508 = pneg %p101
        $region50: #{tpu_custom_call.1} parent=27 // pred_check_branch
          %510 = sbr.rel (%p508) target = $region52
        $region51: #{tpu_custom_call.1} parent=27 // pred_region
          %511 = dma.done [#allocation7], 16
        $region52: #{tpu_custom_call.1} parent=27 // pred_fallthru
          _
      $region28: #{tpu_custom_call.1} parent=5 // pred_fallthru
        _
      %p512 = scmp.le.s32.totalorder 2, %s15
      // Predicated region
      $region53: #{tpu_custom_call.1} parent=5 // pred_check
        %p513 = pneg %p512
      $region54: #{tpu_custom_call.1} parent=5 // pred_check_branch
        %515 = sbr.rel (%p513) target = $region56
      $region55: #{tpu_custom_call.1} parent=5 // pred_region
        %s516 = ssub.s32 %s15, 2
      $region56: #{tpu_custom_call.1} parent=5 // pred_fallthru
        _
    $region6: #{tpu_custom_call.1} parent=1 // loop_footer
      %s19 = sadd.s32 1, %s15
    $region7: #{tpu_custom_call.1} parent=1 // loop_footer_branch
      %14 = sbr.rel target = $region3
    $region8: #{tpu_custom_call.1} parent=1 // loop_exit
      _
    %517 = vsyncpa [#allocation6], 1
    %s518 = scalar_lea.sflag [#allocation6], 1
    %519 = vsyncpa %s518, 1
    %520 = vsyncpa [#allocation9], 1
    %s521 = scalar_lea.sflag [#allocation9], 1
    %522 = vsyncpa %s521, 1
    %523 = vsyncpa [#allocation7], 1
    %s524 = scalar_lea.sflag [#allocation7], 1
    %525 = vsyncpa %s524, 1

</llo_original>
